<compile_context>
chip_gen: v7x
topology: tpu7x:2x2x1
jax: 0.10.0
libtpu: 0.0.40
codegen_flags: <defaults>
</compile_context>

<pallas_src>
import math

import jax
import jax.numpy as jnp
from jax.experimental import pallas as pl
from jax.experimental.pallas import tpu as pltpu


def _pick_tile(n, preferred, min_tile):
    """Largest tile <= preferred that divides n (power-of-two steps); else n."""
    if n <= preferred:
        return n
    t = preferred
    while t >= min_tile:
        if n % t == 0:
            return t
        t //= 2
    return n  # TODO(synk): proper ragged tiling for awkward seq/dim sizes.


# ----------------------------- kernels ------------------------------------ #

def _qkv_proj_kernel(x_ref, wq_ref, wk_ref, wv_ref, q_ref, k_ref, v_ref):
    x = x_ref[...]                                        # (tm, D) bf16
    q_ref[...] = jnp.dot(x, wq_ref[...],
                         preferred_element_type=jnp.float32).astype(jnp.bfloat16)
    k_ref[...] = jnp.dot(x, wk_ref[...],
                         preferred_element_type=jnp.float32).astype(jnp.bfloat16)
    v_ref[...] = jnp.dot(x, wv_ref[...],
                         preferred_element_type=jnp.float32).astype(jnp.bfloat16)


def _attn_kernel(q_ref, k_ref, v_ref, mask_ref, wo_ref, o_ref,
                 m_sc, l_sc, ctx_sc, out_sc):
    h = pl.program_id(2)
    kv = pl.program_id(3)
    nh = pl.num_programs(2)
    nkv = pl.num_programs(3)

    # Fresh (batch, q-tile): zero the cross-head output accumulator.
    @pl.when(jnp.logical_and(h == 0, kv == 0))
    def _():
        out_sc[...] = jnp.zeros_like(out_sc)

    # Fresh head: reset the online-softmax state.
    @pl.when(kv == 0)
    def _():
        m_sc[...] = jnp.full_like(m_sc, -jnp.inf)
        l_sc[...] = jnp.zeros_like(l_sc)
        ctx_sc[...] = jnp.zeros_like(ctx_sc)

    q = q_ref[0, 0]            # (tq, hd) bf16 ; 1/sqrt(hd) pre-folded into wq
    k = k_ref[0, 0]            # (tkv, hd) bf16
    v = v_ref[0, 0]            # (tkv, hd) bf16

    # scores = q @ k^T with f32 accumulation, no explicit transpose/relayout.
    s = jax.lax.dot_general(q, k, dimension_numbers=(((1,), (1,)), ((), ())),
                            preferred_element_type=jnp.float32)      # (tq, tkv)
    s = s + mask_ref[...]

    # Online softmax (unnormalized accumulation; normalize once per head).
    m_prev = m_sc[...]
    m_new = jnp.maximum(m_prev, jnp.max(s, axis=-1, keepdims=True))
    alpha = jnp.exp(m_prev - m_new)
    p = jnp.exp(s - m_new)
    l_sc[...] = alpha * l_sc[...] + jnp.sum(p, axis=-1, keepdims=True)
    ctx_sc[...] = alpha * ctx_sc[...] + jnp.dot(
        p.astype(jnp.bfloat16), v, preferred_element_type=jnp.float32)
    m_sc[...] = m_new

    # Last kv tile of this head: normalize (EUP reciprocal) and project through
    # this head's (hd, D) slab of wo^T, accumulating across heads.
    @pl.when(kv == nkv - 1)
    def _():
        inv_l = pl.reciprocal(l_sc[...], approx=True)
        ctx = (ctx_sc[...] * inv_l).astype(jnp.bfloat16)              # (tq, hd)
        out_sc[...] += jnp.dot(ctx, wo_ref[0],
                               preferred_element_type=jnp.float32)

    # Last head & last kv tile: emit the lane-dense (tq, D) output block.
    @pl.when(jnp.logical_and(h == nh - 1, kv == nkv - 1))
    def _():
        o_ref[...] = out_sc[...]


# ----------------------------- wrapper ------------------------------------ #

def attention_forward(x, wq, wk, wv, wo, mask, *, n_heads):
    """x: (bs, S, D) f32; wq/wk/wv/wo: PyTorch-style (out, in) f32; mask: (S, S)."""
    bs, S, D = x.shape
    assert D % n_heads == 0
    hd = D // n_heads
    M = bs * S
    scale = 1.0 / math.sqrt(hd)

    # Wrapper-side layout plumbing / casts (plain XLA glue).
    x2 = x.reshape(M, D).astype(jnp.bfloat16)
    wq_t = (wq.T * scale).astype(jnp.bfloat16)          # scale folded into wq
    wk_t = wk.T.astype(jnp.bfloat16)
    wv_t = wv.T.astype(jnp.bfloat16)
    wo_r = wo.T.reshape(n_heads, hd, D).astype(jnp.bfloat16)
    mask = mask.astype(jnp.float32)

    vmem_bytes = 48 * 1024 * 1024   # above v5e's 16 MiB scoped default

    # ---- 1) fused QKV projection on the flattened (bs*S, D) problem ----
    tm = _pick_tile(M, 256, 8)
    tn = _pick_tile(D, 512, 128)
    nm, nn = M // tm, D // tn

    q2, k2, v2 = pl.pallas_call(
        _qkv_proj_kernel,
        out_shape=tuple(jax.ShapeDtypeStruct((M, D), jnp.bfloat16)
                        for _ in range(3)),
        grid_spec=pltpu.PrefetchScalarGridSpec(
            num_scalar_prefetch=0,
            grid=(nm, nn),
            in_specs=[
                pl.BlockSpec((tm, D), lambda m, n: (m, 0)),     # x rows
                pl.BlockSpec((D, tn), lambda m, n: (0, n)),     # wq^T * scale
                pl.BlockSpec((D, tn), lambda m, n: (0, n)),     # wk^T
                pl.BlockSpec((D, tn), lambda m, n: (0, n)),     # wv^T
            ],
            out_specs=[pl.BlockSpec((tm, tn), lambda m, n: (m, n))] * 3,
        ),
        compiler_params=pltpu.CompilerParams(
            dimension_semantics=("parallel", "parallel"),
            vmem_limit_bytes=vmem_bytes),
    )(x2, wq_t, wk_t, wv_t)

    # (bs*S, D) -> (bs, H, S, hd): clean per-(batch, head) tiles for attention.
    qh = q2.reshape(bs, S, n_heads, hd).transpose(0, 2, 1, 3)
    kh = k2.reshape(bs, S, n_heads, hd).transpose(0, 2, 1, 3)
    vh = v2.reshape(bs, S, n_heads, hd).transpose(0, 2, 1, 3)

    # ---- 2) flash-style attention + output projection ----
    tq = _pick_tile(S, 256, 8)
    tkv = _pick_tile(S, 512, 128)
    nq, nkv = S // tq, S // tkv

    out2 = pl.pallas_call(
        _attn_kernel,
        out_shape=jax.ShapeDtypeStruct((M, D), jnp.float32),
        grid_spec=pltpu.PrefetchScalarGridSpec(
            num_scalar_prefetch=0,
            grid=(bs, nq, n_heads, nkv),
            in_specs=[
                pl.BlockSpec((1, 1, tq, hd),
                             lambda b, qi, h, kv: (b, h, qi, 0)),   # q
                pl.BlockSpec((1, 1, tkv, hd),
                             lambda b, qi, h, kv: (b, h, kv, 0)),   # k
                pl.BlockSpec((1, 1, tkv, hd),
                             lambda b, qi, h, kv: (b, h, kv, 0)),   # v
                pl.BlockSpec((tq, tkv),
                             lambda b, qi, h, kv: (qi, kv)),        # mask tile
                pl.BlockSpec((1, hd, D),
                             lambda b, qi, h, kv: (h, 0, 0)),       # wo^T slab
            ],
            out_specs=pl.BlockSpec((tq, D),
                                   lambda b, qi, h, kv: (b * nq + qi, 0)),
            scratch_shapes=[
                pltpu.VMEM((tq, 1), jnp.float32),    # running max
                pltpu.VMEM((tq, 1), jnp.float32),    # running sum
                pltpu.VMEM((tq, hd), jnp.float32),   # per-head ctx accumulator
                pltpu.VMEM((tq, D), jnp.float32),    # cross-head out accumulator
            ],
        ),
        compiler_params=pltpu.CompilerParams(
            dimension_semantics=("parallel", "parallel", "arbitrary", "arbitrary"),
            vmem_limit_bytes=vmem_bytes),
    )(qh, kh, vh, mask, wo_r)

    return out2.reshape(bs, S, D)


# ----------------------------- reference ---------------------------------- #

def attention_reference(x, wq, wk, wv, wo, mask, *, n_heads):
    """Pure-JAX f32 reference mirroring the PyTorch forward exactly."""
    bs, S, D = x.shape
    hd = D // n_heads
    q = x @ wq.T
    k = x @ wk.T
    v = x @ wv.T
    q = q.reshape(bs, S, n_heads, hd).transpose(0, 2, 1, 3)
    k = k.reshape(bs, S, n_heads, hd).transpose(0, 2, 1, 3)
    v = v.reshape(bs, S, n_heads, hd).transpose(0, 2, 1, 3)
    attn = (q @ jnp.swapaxes(k, -2, -1)) / math.sqrt(hd)
    attn = attn + mask[None, None, :, :]
    attn = jax.nn.softmax(attn, axis=-1)
    ctx = attn @ v
    ctx = ctx.transpose(0, 2, 1, 3).reshape(bs, S, D)
    return ctx @ wo.T


if __name__ == "__main__":
    # Small shapes consistent with the module: dim=32, n_heads=4 -> head_dim=8.
    bs, seqlen, dim, n_heads = 2, 8, 32, 4

    key = jax.random.PRNGKey(0)
    kx, kq, kk, kvk, ko = jax.random.split(key, 5)

    x = jax.random.normal(kx, (bs, seqlen, dim), dtype=jnp.float32)
    w_scale = 1.0 / math.sqrt(dim)   # PyTorch Linear weight shape: (out, in)
    wq = jax.random.normal(kq, (dim, dim), dtype=jnp.float32) * w_scale
    wk = jax.random.normal(kk, (dim, dim), dtype=jnp.float32) * w_scale
    wv = jax.random.normal(kvk, (dim, dim), dtype=jnp.float32) * w_scale
    wo = jax.random.normal(ko, (dim, dim), dtype=jnp.float32) * w_scale

    # Additive causal mask (S, S), broadcast over batch and heads.
    causal = jnp.tril(jnp.ones((seqlen, seqlen), dtype=bool))
    mask = jnp.where(causal, 0.0, -1e9).astype(jnp.float32)

    out = attention_forward(x, wq, wk, wv, wo, mask, n_heads=n_heads)
    out = jax.block_until_ready(out)

    ref = attention_reference(x, wq, wk, wv, wo, mask, n_heads=n_heads)
    assert out.shape == (bs, seqlen, dim)
    # bf16 compute with f32 accumulation vs. an f32 reference -> loose tolerance.
    assert jnp.allclose(out, ref, atol=5e-2, rtol=5e-2), (
        f"mismatch vs JAX reference; max abs diff = {jnp.max(jnp.abs(out - ref))}")

    print("KERNEL_OK")
</pallas_src>

<mosaic_0001>
module attributes {stable_mosaic.version = 11 : i64} {
  func.func @_qkv_proj_kernel(%arg0: i32, %arg1: i32, %arg2: memref<16x32xbf16, #tpu.memory_space<vmem>>, %arg3: memref<32x32xbf16, #tpu.memory_space<vmem>>, %arg4: memref<32x32xbf16, #tpu.memory_space<vmem>>, %arg5: memref<32x32xbf16, #tpu.memory_space<vmem>>, %arg6: memref<16x32xbf16, #tpu.memory_space<vmem>>, %arg7: memref<16x32xbf16, #tpu.memory_space<vmem>>, %arg8: memref<16x32xbf16, #tpu.memory_space<vmem>>) attributes {dimension_semantics = [#tpu.dimension_semantics<parallel>, #tpu.dimension_semantics<parallel>], iteration_bounds = array<i64: 1, 1>, scalar_prefetch = 0 : i64, scratch_operands = 0 : i64, tpu.core_type = #tpu.core_type<tc>, window_params = [{transform_indices = @transform_0, window_bounds = array<i64: 16, 32>}, {transform_indices = @transform_1, window_bounds = array<i64: 32, 32>}, {transform_indices = @transform_2, window_bounds = array<i64: 32, 32>}, {transform_indices = @transform_3, window_bounds = array<i64: 32, 32>}, {transform_indices = @transform_4, window_bounds = array<i64: 16, 32>}, {transform_indices = @transform_5, window_bounds = array<i64: 16, 32>}, {transform_indices = @transform_6, window_bounds = array<i64: 16, 32>}]} {
    %c0 = arith.constant 0 : index
    %c0_0 = arith.constant 0 : index
    %0 = vector.load %arg2[%c0, %c0_0] : memref<16x32xbf16, #tpu.memory_space<vmem>>, vector<16x32xbf16>
    %c0_1 = arith.constant 0 : index
    %c0_2 = arith.constant 0 : index
    %1 = vector.load %arg3[%c0_1, %c0_2] : memref<32x32xbf16, #tpu.memory_space<vmem>>, vector<32x32xbf16>
    %cst = arith.constant dense<0.000000e+00> : vector<16x32xf32>
    %2 = tpu.matmul %0, %1, %cst {dimension_numbers = #tpu.dot_dimension_numbers<[1], [0], [0], [1], [0, 0, 1, 1], [], []>} : vector<16x32xbf16>, vector<32x32xbf16>, vector<16x32xf32> -> vector<16x32xf32>
    %3 = arith.truncf %2 : vector<16x32xf32> to vector<16x32xbf16>
    %c0_3 = arith.constant 0 : index
    %c0_4 = arith.constant 0 : index
    %4 = vector.load %arg6[%c0_3, %c0_4] : memref<16x32xbf16, #tpu.memory_space<vmem>>, vector<16x32xbf16>
    tpu.vector_store %arg6[%c0_3, %c0_4], %3 {strides = array<i32>} : memref<16x32xbf16, #tpu.memory_space<vmem>>, vector<16x32xbf16>,
    %c0_5 = arith.constant 0 : index
    %c0_6 = arith.constant 0 : index
    %5 = vector.load %arg4[%c0_5, %c0_6] : memref<32x32xbf16, #tpu.memory_space<vmem>>, vector<32x32xbf16>
    %cst_7 = arith.constant dense<0.000000e+00> : vector<16x32xf32>
    %6 = tpu.matmul %0, %5, %cst_7 {dimension_numbers = #tpu.dot_dimension_numbers<[1], [0], [0], [1], [0, 0, 1, 1], [], []>} : vector<16x32xbf16>, vector<32x32xbf16>, vector<16x32xf32> -> vector<16x32xf32>
    %7 = arith.truncf %6 : vector<16x32xf32> to vector<16x32xbf16>
    %c0_8 = arith.constant 0 : index
    %c0_9 = arith.constant 0 : index
    %8 = vector.load %arg7[%c0_8, %c0_9] : memref<16x32xbf16, #tpu.memory_space<vmem>>, vector<16x32xbf16>
    tpu.vector_store %arg7[%c0_8, %c0_9], %7 {strides = array<i32>} : memref<16x32xbf16, #tpu.memory_space<vmem>>, vector<16x32xbf16>,
    %c0_10 = arith.constant 0 : index
    %c0_11 = arith.constant 0 : index
    %9 = vector.load %arg5[%c0_10, %c0_11] : memref<32x32xbf16, #tpu.memory_space<vmem>>, vector<32x32xbf16>
    %cst_12 = arith.constant dense<0.000000e+00> : vector<16x32xf32>
    %10 = tpu.matmul %0, %9, %cst_12 {dimension_numbers = #tpu.dot_dimension_numbers<[1], [0], [0], [1], [0, 0, 1, 1], [], []>} : vector<16x32xbf16>, vector<32x32xbf16>, vector<16x32xf32> -> vector<16x32xf32>
    %11 = arith.truncf %10 : vector<16x32xf32> to vector<16x32xbf16>
    %c0_13 = arith.constant 0 : index
    %c0_14 = arith.constant 0 : index
    %12 = vector.load %arg8[%c0_13, %c0_14] : memref<16x32xbf16, #tpu.memory_space<vmem>>, vector<16x32xbf16>
    tpu.vector_store %arg8[%c0_13, %c0_14], %11 {strides = array<i32>} : memref<16x32xbf16, #tpu.memory_space<vmem>>, vector<16x32xbf16>,
    return
  }
  func.func @transform_0(%arg0: i32, %arg1: i32) -> (i32, i32) {
    %c0_i32 = arith.constant 0 : i32
    %c0_i32_0 = arith.constant 0 : i32
    return %arg0, %c0_i32 : i32, i32
  }
  func.func @transform_1(%arg0: i32, %arg1: i32) -> (i32, i32) {
    %c0_i32 = arith.constant 0 : i32
    %c0_i32_0 = arith.constant 0 : i32
    return %c0_i32, %arg1 : i32, i32
  }
  func.func @transform_2(%arg0: i32, %arg1: i32) -> (i32, i32) {
    %c0_i32 = arith.constant 0 : i32
    %c0_i32_0 = arith.constant 0 : i32
    return %c0_i32, %arg1 : i32, i32
  }
  func.func @transform_3(%arg0: i32, %arg1: i32) -> (i32, i32) {
    %c0_i32 = arith.constant 0 : i32
    %c0_i32_0 = arith.constant 0 : i32
    return %c0_i32, %arg1 : i32, i32
  }
  func.func @transform_4(%arg0: i32, %arg1: i32) -> (i32, i32) {
    %c0_i32 = arith.constant 0 : i32
    return %arg0, %arg1 : i32, i32
  }
  func.func @transform_5(%arg0: i32, %arg1: i32) -> (i32, i32) {
    %c0_i32 = arith.constant 0 : i32
    return %arg0, %arg1 : i32, i32
  }
  func.func @transform_6(%arg0: i32, %arg1: i32) -> (i32, i32) {
    %c0_i32 = arith.constant 0 : i32
    return %arg0, %arg1 : i32, i32
  }
}

</mosaic_0001>

<llo_original>
// kernel: tpu_custom_call.1
$region0: #{tpu_custom_call.1}
  #allocation0 [shape = 'u32[]', space=smem, size = 0x4, offset = 0x4, fixed_abs, tag = 'smem constant byte address 0x4 - core index']
  #allocation1 [shape = 'u32[144,128]{1,0:T(1,128)}', space=vmem, size = 0x12000, scoped, tag = 'internal scratch']
  %s0 = inlined_call_operand.hbm [shape: bf16[16,32], index: 0, kind: input, shape index: {}]
  %s1 = inlined_call_operand.hbm [shape: bf16[32,32], index: 1, kind: input, shape index: {}]
  %s2 = inlined_call_operand.hbm [shape: bf16[32,32], index: 2, kind: input, shape index: {}]
  %s3 = inlined_call_operand.hbm [shape: bf16[32,32], index: 3, kind: input, shape index: {}]
  %s4 = inlined_call_operand.hbm [shape: bf16[16,32], index: 4, kind: output, shape index: {0}]
  %s5 = inlined_call_operand.hbm [shape: bf16[16,32], index: 5, kind: output, shape index: {1}]
  %s6 = inlined_call_operand.hbm [shape: bf16[16,32], index: 6, kind: output, shape index: {2}]
  %7 = xla_tuple %s4, %s5, %s6
  %s8 = sld [smem:[#allocation0]]
  $region58: #{tpu_custom_call.1} parent=0
    _
  %s10 = ssub.s32 1, %s8
  %s11 = scalar_select 0, %s10, %s8
  $region1: #{tpu_custom_call.1} parent=0
    #allocation2 [shape = 'u8[4096]{0}', space=vmem, size = 0x1000, scoped, tag = 'input window, operand 0, single buffered']
    #allocation3 [shape = 's32[1]{0}', space=sflag, size = 0x4, scoped, tag = 'scoped memory for tpu_custom_call.1']
    #allocation4 [shape = 's32[1]{0}', space=sflag, size = 0x4, scoped, tag = 'scoped memory for tpu_custom_call.1']
    #allocation5 [shape = 'u8[8192]{0}', space=vmem, size = 0x2000, scoped, tag = 'input window, operand 1, single buffered']
    #allocation6 [shape = 's32[1]{0}', space=sflag, size = 0x4, scoped, tag = 'scoped memory for tpu_custom_call.1']
    #allocation7 [shape = 'u8[8192]{0}', space=vmem, size = 0x2000, scoped, tag = 'input window, operand 2, single buffered']
    #allocation8 [shape = 'u8[8192]{0}', space=vmem, size = 0x2000, scoped, tag = 'input window, operand 3, single buffered']
    #allocation9 [shape = 's32[1]{0}', space=sflag, size = 0x4, scoped, tag = 'scoped memory for tpu_custom_call.1']
    #allocation10 [shape = 'u8[4096]{0}', space=vmem, size = 0x1000, scoped, tag = 'output window, operand 0, single buffered']
    #allocation11 [shape = 'u8[4096]{0}', space=vmem, size = 0x1000, scoped, tag = 'output window, operand 1, single buffered']
    #allocation12 [shape = 's32[1]{0}', space=sflag, size = 0x4, scoped, tag = 'scoped memory for tpu_custom_call.1']
    #allocation13 [shape = 'u8[4096]{0}', space=vmem, size = 0x1000, scoped, tag = 'output window, operand 2, single buffered']
    %12 = vsyncpa [#allocation3], 0
    %13 = vsyncpa [#allocation6], 0
    %14 = vsyncpa [#allocation9], 0
    %15 = vsyncpa [#allocation4], 0
    %16 = vsyncpa [#allocation12], 0
    // Predicated region
    $region2: #{tpu_custom_call.1} parent=1 // pred_check
      _
    $region3: #{tpu_custom_call.1} parent=1 // pred_check_branch
      %18 = sbr.rel (0) target = $region5
    $region4: #{tpu_custom_call.1} parent=1 // pred_region
      %s20 = ssub.s32 128, 128
      %21 = vsyncadd [#allocation3], %s20
      %s22 = sshll.u32 [#allocation2], 4
      %s23 = int_to_ptr.vmem [resolvable:$true] %s22
      %28 = dma.hbm_to_vmem [thread:$0]  %s0, 128, %s23, [#allocation3], 64, 64, 4
    $region5: #{tpu_custom_call.1} parent=1 // pred_fallthru
      _
    // Predicated region
    $region6: #{tpu_custom_call.1} parent=1 // pred_check
      _
    $region7: #{tpu_custom_call.1} parent=1 // pred_check_branch
      %30 = sbr.rel (0) target = $region9
    $region8: #{tpu_custom_call.1} parent=1 // pred_region
      %s32 = ssub.s32 256, 256
      %33 = vsyncadd [#allocation6], %s32
      %s34 = sshll.u32 [#allocation5], 4
      %s35 = int_to_ptr.vmem [resolvable:$true] %s34
      %40 = dma.hbm_to_vmem [thread:$0]  %s1, 256, %s35, [#allocation6], 64, 64, 4
    $region9: #{tpu_custom_call.1} parent=1 // pred_fallthru
      _
    // Predicated region
    $region10: #{tpu_custom_call.1} parent=1 // pred_check
      _
    $region11: #{tpu_custom_call.1} parent=1 // pred_check_branch
      %42 = sbr.rel (0) target = $region13
    $region12: #{tpu_custom_call.1} parent=1 // pred_region
      %s44 = ssub.s32 256, 256
      %45 = vsyncadd [#allocation6], %s44
      %s46 = sshll.u32 [#allocation7], 4
      %s47 = int_to_ptr.vmem [resolvable:$true] %s46
      %52 = dma.hbm_to_vmem [thread:$0]  %s2, 256, %s47, [#allocation6], 64, 64, 4
    $region13: #{tpu_custom_call.1} parent=1 // pred_fallthru
      _
    // Predicated region
    $region14: #{tpu_custom_call.1} parent=1 // pred_check
      _
    $region15: #{tpu_custom_call.1} parent=1 // pred_check_branch
      %54 = sbr.rel (0) target = $region17
    $region16: #{tpu_custom_call.1} parent=1 // pred_region
      %s56 = ssub.s32 256, 256
      %57 = vsyncadd [#allocation9], %s56
      %s58 = sshll.u32 [#allocation8], 4
      %s59 = int_to_ptr.vmem [resolvable:$true] %s58
      %64 = dma.hbm_to_vmem [thread:$0]  %s3, 256, %s59, [#allocation9], 64, 64, 4
    $region17: #{tpu_custom_call.1} parent=1 // pred_fallthru
      _
    // Predicated region
    $region18: #{tpu_custom_call.1} parent=1 // pred_check
      _
    $region19: #{tpu_custom_call.1} parent=1 // pred_check_branch
      %66 = sbr.rel (0) target = $region21
    $region20: #{tpu_custom_call.1} parent=1 // pred_region
      %67 = dma.done [#allocation3], 128
    $region21: #{tpu_custom_call.1} parent=1 // pred_fallthru
      _
    // Predicated region
    $region22: #{tpu_custom_call.1} parent=1 // pred_check
      _
    $region23: #{tpu_custom_call.1} parent=1 // pred_check_branch
      %69 = sbr.rel (0) target = $region25
    $region24: #{tpu_custom_call.1} parent=1 // pred_region
      %70 = dma.done [#allocation6], 256
    $region25: #{tpu_custom_call.1} parent=1 // pred_fallthru
      _
    // Predicated region
    $region26: #{tpu_custom_call.1} parent=1 // pred_check
      _
    $region27: #{tpu_custom_call.1} parent=1 // pred_check_branch
      %72 = sbr.rel (0) target = $region29
    $region28: #{tpu_custom_call.1} parent=1 // pred_region
      %73 = dma.done [#allocation6], 256
    $region29: #{tpu_custom_call.1} parent=1 // pred_fallthru
      _
    // Predicated region
    $region30: #{tpu_custom_call.1} parent=1 // pred_check
      _
    $region31: #{tpu_custom_call.1} parent=1 // pred_check_branch
      %75 = sbr.rel (0) target = $region33
    $region32: #{tpu_custom_call.1} parent=1 // pred_region
      %76 = dma.done [#allocation9], 256
    $region33: #{tpu_custom_call.1} parent=1 // pred_fallthru
      _
    %v78 = vld [vmem:[#allocation2] sm:$0xf]
    %v79 = vld [vmem:[#allocation2 + $0x4] sm:$0xf]
    %v80 = vld [vmem:[#allocation5] sm:$0xf]
    %v81 = vld [vmem:[#allocation5 + $0x4] sm:$0xf]
    %v82 = vld [vmem:[#allocation5 + $0x8] sm:$0xf]
    %v83 = vld [vmem:[#allocation5 + $0xc] sm:$0xf]
    %v86 = vunpack.c.l.b16 %v78
    %v87 = vunpack.c.l.b16 %v79
    %v88 = vpack.c.b16 %v87, %v86
    %v93 = vunpack.c.l.b16 %v80
    %v94 = vunpack.c.l.b16 %v81
    %v95 = vunpack.c.l.b16 %v82
    %v96 = vunpack.c.l.b16 %v83
    %v97 = vpack.c.b16 %v94, %v93
    %v98 = vpack.c.b16 %v96, %v95
    %vm101 = vcmask 261120
    %v103 = vsel %vm101, %v88, 0
    %105 = vmatprep.subr.bf16.mxu0 0
    %106 = vmatpush1.bf16.msra.mxu0 %v97
    %107 = vmatprep.subr.bf16.mxu0 0
    %108 = vmatpush1.bf16.msra.mxu0 %v98
    %109 = vmatprep.subr.bf16.mxu0 0
    %110 = vmatpush1.bf16.msra.mxu0 0
    %111 = vmatprep.subr.bf16.mxu0 0
    %112 = vmatpush1.bf16.msra.mxu0 0
    %113 = vmatprep.subr.bf16.mxu0 0
    %114 = vmatpush1.bf16.msra.mxu0 0
    %115 = vmatprep.subr.bf16.mxu0 0
    %116 = vmatpush1.bf16.msra.mxu0 0
    %117 = vmatprep.subr.bf16.mxu0 0
    %118 = vmatpush1.bf16.msra.mxu0 0
    %119 = vmatprep.subr.bf16.mxu0 0
    %120 = vmatpush1.bf16.msra.mxu0 0
    %121 = vmatprep.subr.bf16.mxu0 0
    %122 = vmatpush1.bf16.msra.mxu0 0
    %123 = vmatprep.subr.bf16.mxu0 0
    %124 = vmatpush1.bf16.msra.mxu0 0
    %125 = vmatprep.subr.bf16.mxu0 0
    %126 = vmatpush1.bf16.msra.mxu0 0
    %127 = vmatprep.subr.bf16.mxu0 0
    %128 = vmatpush1.bf16.msra.mxu0 0
    %129 = vmatprep.subr.bf16.mxu0 0
    %130 = vmatpush1.bf16.msra.mxu0 0
    %131 = vmatprep.subr.bf16.mxu0 0
    %132 = vmatpush1.bf16.msra.mxu0 0
    %133 = vmatprep.subr.bf16.mxu0 0
    %134 = vmatpush1.bf16.msra.mxu0 0
    %135 = vmatprep.subr.bf16.mxu0 0
    %136 = vmatpush1.bf16.msra.mxu0 0
    %137 = vmatprep.mubr.bf16.mxu0 0
    %138 = vmatmul.mubr.bf16.gmra.mrb[0].mxu0 %v103
    %v139 = vpop.f32.mrb[0].mxu0
    %v140 = vadd.f32 0.0, %v139
    %v141 = vpop.f32.mrb[0].mxu0
    %v142 = vpop.f32.mrb[0].mxu0
    %v143 = vadd.f32 0.0, %v142
    %v144 = vpop.f32.mrb[0].mxu0
    %145 = vdwg.mxu0
    %v146 = vpack.c.bf16 %v143, %v140
    %v148 = vunpack.c.l.b16 %v146
    %v149 = vunpack.c.h.b16 %v146
    %v150 = vpack.c.b16 %v148, %v148
    %v151 = vpack.c.b16 %v149, %v149
    %vm154 = vcmask 257024
    %155 = vst.msk [vmem:[#allocation10] sm:$0xf] %vm154, %v150
    %156 = vst.msk [vmem:[#allocation10 + $0x4] sm:$0xf] %vm154, %v151
    %v157 = vld [vmem:[#allocation7] sm:$0xf]
    %v158 = vld [vmem:[#allocation7 + $0x4] sm:$0xf]
    %v159 = vld [vmem:[#allocation7 + $0x8] sm:$0xf]
    %v160 = vld [vmem:[#allocation7 + $0xc] sm:$0xf]
    %v165 = vunpack.c.l.b16 %v157
    %v166 = vunpack.c.l.b16 %v158
    %v167 = vunpack.c.l.b16 %v159
    %v168 = vunpack.c.l.b16 %v160
    %v169 = vpack.c.b16 %v166, %v165
    %v170 = vpack.c.b16 %v168, %v167
    %173 = vmatprep.subr.bf16.mxu0 0
    %174 = vmatpush1.bf16.msra.mxu0 %v169
    %175 = vmatprep.subr.bf16.mxu0 0
    %176 = vmatpush1.bf16.msra.mxu0 %v170
    %177 = vmatprep.subr.bf16.mxu0 0
    %178 = vmatpush1.bf16.msra.mxu0 0
    %179 = vmatprep.subr.bf16.mxu0 0
    %180 = vmatpush1.bf16.msra.mxu0 0
    %181 = vmatprep.subr.bf16.mxu0 0
    %182 = vmatpush1.bf16.msra.mxu0 0
    %183 = vmatprep.subr.bf16.mxu0 0
    %184 = vmatpush1.bf16.msra.mxu0 0
    %185 = vmatprep.subr.bf16.mxu0 0
    %186 = vmatpush1.bf16.msra.mxu0 0
    %187 = vmatprep.subr.bf16.mxu0 0
    %188 = vmatpush1.bf16.msra.mxu0 0
    %189 = vmatprep.subr.bf16.mxu0 0
    %190 = vmatpush1.bf16.msra.mxu0 0
    %191 = vmatprep.subr.bf16.mxu0 0
    %192 = vmatpush1.bf16.msra.mxu0 0
    %193 = vmatprep.subr.bf16.mxu0 0
    %194 = vmatpush1.bf16.msra.mxu0 0
    %195 = vmatprep.subr.bf16.mxu0 0
    %196 = vmatpush1.bf16.msra.mxu0 0
    %197 = vmatprep.subr.bf16.mxu0 0
    %198 = vmatpush1.bf16.msra.mxu0 0
    %199 = vmatprep.subr.bf16.mxu0 0
    %200 = vmatpush1.bf16.msra.mxu0 0
    %201 = vmatprep.subr.bf16.mxu0 0
    %202 = vmatpush1.bf16.msra.mxu0 0
    %203 = vmatprep.subr.bf16.mxu0 0
    %204 = vmatpush1.bf16.msra.mxu0 0
    %205 = vmatprep.mubr.bf16.mxu0 0
    %206 = vmatmul.mubr.bf16.gmra.mrb[0].mxu0 %v103
    %v207 = vpop.f32.mrb[0].mxu0
    %v208 = vadd.f32 0.0, %v207
    %v209 = vpop.f32.mrb[0].mxu0
    %v210 = vpop.f32.mrb[0].mxu0
    %v211 = vadd.f32 0.0, %v210
    %v212 = vpop.f32.mrb[0].mxu0
    %213 = vdwg.mxu0
    %v214 = vpack.c.bf16 %v211, %v208
    %v216 = vunpack.c.l.b16 %v214
    %v217 = vunpack.c.h.b16 %v214
    %v218 = vpack.c.b16 %v216, %v216
    %v219 = vpack.c.b16 %v217, %v217
    %222 = vst.msk [vmem:[#allocation11] sm:$0xf] %vm154, %v218
    %223 = vst.msk [vmem:[#allocation11 + $0x4] sm:$0xf] %vm154, %v219
    %v224 = vld [vmem:[#allocation8] sm:$0xf]
    %v225 = vld [vmem:[#allocation8 + $0x4] sm:$0xf]
    %v226 = vld [vmem:[#allocation8 + $0x8] sm:$0xf]
    %v227 = vld [vmem:[#allocation8 + $0xc] sm:$0xf]
    %v232 = vunpack.c.l.b16 %v224
    %v233 = vunpack.c.l.b16 %v225
    %v234 = vunpack.c.l.b16 %v226
    %v235 = vunpack.c.l.b16 %v227
    %v236 = vpack.c.b16 %v233, %v232
    %v237 = vpack.c.b16 %v235, %v234
    %240 = vmatprep.subr.bf16.mxu0 0
    %241 = vmatpush1.bf16.msra.mxu0 %v236
    %242 = vmatprep.subr.bf16.mxu0 0
    %243 = vmatpush1.bf16.msra.mxu0 %v237
    %244 = vmatprep.subr.bf16.mxu0 0
    %245 = vmatpush1.bf16.msra.mxu0 0
    %246 = vmatprep.subr.bf16.mxu0 0
    %247 = vmatpush1.bf16.msra.mxu0 0
    %248 = vmatprep.subr.bf16.mxu0 0
    %249 = vmatpush1.bf16.msra.mxu0 0
    %250 = vmatprep.subr.bf16.mxu0 0
    %251 = vmatpush1.bf16.msra.mxu0 0
    %252 = vmatprep.subr.bf16.mxu0 0
    %253 = vmatpush1.bf16.msra.mxu0 0
    %254 = vmatprep.subr.bf16.mxu0 0
    %255 = vmatpush1.bf16.msra.mxu0 0
    %256 = vmatprep.subr.bf16.mxu0 0
    %257 = vmatpush1.bf16.msra.mxu0 0
    %258 = vmatprep.subr.bf16.mxu0 0
    %259 = vmatpush1.bf16.msra.mxu0 0
    %260 = vmatprep.subr.bf16.mxu0 0
    %261 = vmatpush1.bf16.msra.mxu0 0
    %262 = vmatprep.subr.bf16.mxu0 0
    %263 = vmatpush1.bf16.msra.mxu0 0
    %264 = vmatprep.subr.bf16.mxu0 0
    %265 = vmatpush1.bf16.msra.mxu0 0
    %266 = vmatprep.subr.bf16.mxu0 0
    %267 = vmatpush1.bf16.msra.mxu0 0
    %268 = vmatprep.subr.bf16.mxu0 0
    %269 = vmatpush1.bf16.msra.mxu0 0
    %270 = vmatprep.subr.bf16.mxu0 0
    %271 = vmatpush1.bf16.msra.mxu0 0
    %272 = vmatprep.mubr.bf16.mxu0 0
    %273 = vmatmul.mubr.bf16.gmra.mrb[0].mxu0 %v103
    %v274 = vpop.f32.mrb[0].mxu0
    %v275 = vadd.f32 0.0, %v274
    %v276 = vpop.f32.mrb[0].mxu0
    %v277 = vpop.f32.mrb[0].mxu0
    %v278 = vadd.f32 0.0, %v277
    %v279 = vpop.f32.mrb[0].mxu0
    %280 = vdwg.mxu0
    %v281 = vpack.c.bf16 %v278, %v275
    %v283 = vunpack.c.l.b16 %v281
    %v284 = vunpack.c.h.b16 %v281
    %v285 = vpack.c.b16 %v283, %v283
    %v286 = vpack.c.b16 %v284, %v284
    %289 = vst.msk [vmem:[#allocation13] sm:$0xf] %vm154, %v285
    %290 = vst.msk [vmem:[#allocation13 + $0x4] sm:$0xf] %vm154, %v286
    // Predicated region
    $region34: #{tpu_custom_call.1} parent=1 // pred_check
      _
    $region35: #{tpu_custom_call.1} parent=1 // pred_check_branch
      %292 = sbr.rel (0) target = $region37
    $region36: #{tpu_custom_call.1} parent=1 // pred_region
      %s294 = ssub.s32 128, 128
      %295 = vsyncadd [#allocation4], %s294
      %s296 = sshll.u32 [#allocation10], 4
      %s297 = int_to_ptr.vmem [resolvable:$true] %s296
      %302 = dma.vmem_to_hbm [thread:$0]  %s297, 128, %s4, [#allocation4], 64, 64, 4
    $region37: #{tpu_custom_call.1} parent=1 // pred_fallthru
      _
    // Predicated region
    $region38: #{tpu_custom_call.1} parent=1 // pred_check
      _
    $region39: #{tpu_custom_call.1} parent=1 // pred_check_branch
      %304 = sbr.rel (0) target = $region41
    $region40: #{tpu_custom_call.1} parent=1 // pred_region
      %s306 = ssub.s32 128, 128
      %307 = vsyncadd [#allocation12], %s306
      %s308 = sshll.u32 [#allocation11], 4
      %s309 = int_to_ptr.vmem [resolvable:$true] %s308
      %314 = dma.vmem_to_hbm [thread:$0]  %s309, 128, %s5, [#allocation12], 64, 64, 4
    $region41: #{tpu_custom_call.1} parent=1 // pred_fallthru
      _
    // Predicated region
    $region42: #{tpu_custom_call.1} parent=1 // pred_check
      _
    $region43: #{tpu_custom_call.1} parent=1 // pred_check_branch
      %316 = sbr.rel (0) target = $region45
    $region44: #{tpu_custom_call.1} parent=1 // pred_region
      %s318 = ssub.s32 128, 128
      %319 = vsyncadd [#allocation12], %s318
      %s320 = sshll.u32 [#allocation13], 4
      %s321 = int_to_ptr.vmem [resolvable:$true] %s320
      %326 = dma.vmem_to_hbm [thread:$0]  %s321, 128, %s6, [#allocation12], 64, 64, 4
    $region45: #{tpu_custom_call.1} parent=1 // pred_fallthru
      _
    // Predicated region
    $region46: #{tpu_custom_call.1} parent=1 // pred_check
      _
    $region47: #{tpu_custom_call.1} parent=1 // pred_check_branch
      %328 = sbr.rel (0) target = $region49
    $region48: #{tpu_custom_call.1} parent=1 // pred_region
      %329 = dma.done [#allocation4], 128
    $region49: #{tpu_custom_call.1} parent=1 // pred_fallthru
      _
    // Predicated region
    $region50: #{tpu_custom_call.1} parent=1 // pred_check
      _
    $region51: #{tpu_custom_call.1} parent=1 // pred_check_branch
      %331 = sbr.rel (0) target = $region53
    $region52: #{tpu_custom_call.1} parent=1 // pred_region
      %332 = dma.done [#allocation12], 128
    $region53: #{tpu_custom_call.1} parent=1 // pred_fallthru
      _
    // Predicated region
    $region54: #{tpu_custom_call.1} parent=1 // pred_check
      _
    $region55: #{tpu_custom_call.1} parent=1 // pred_check_branch
      %334 = sbr.rel (0) target = $region57
    $region56: #{tpu_custom_call.1} parent=1 // pred_region
      %335 = dma.done [#allocation12], 128
    $region57: #{tpu_custom_call.1} parent=1 // pred_fallthru
      _
    %336 = vsyncpa [#allocation3], 1
    %337 = vsyncpa [#allocation6], 1
    %338 = vsyncpa [#allocation9], 1
    %339 = vsyncpa [#allocation4], 1
    %340 = vsyncpa [#allocation12], 1

</llo_original>
